<compile_context>
chip_gen: v7x
topology: tpu7x:2x2x1
jax: 0.10.0
libtpu: 0.0.40
codegen_flags: <defaults>
</compile_context>

<pallas_src>
import functools

import jax
import jax.numpy as jnp
from jax import lax
from jax.experimental import pallas as pl
from jax.experimental.pallas import tpu as pltpu


LANES = 128
_CHUNK_ROWS = 512          # inner compute chunk (multiple of every sublane packing)
_ONE_SIXTH = 1.0 / 6.0


def _round_up(a: int, m: int) -> int:
    return -(-a // m) * m


@functools.lru_cache(maxsize=1)
def _tpu_config():
    """(default tile bytes per block, has_two_tensorcores) for the local TPU."""
    kind = ""
    try:
        kind = jax.devices()[0].device_kind.lower()
    except Exception:
        pass
    if "v7" in kind or "7x" in kind:
        # ~3.2 TB/s HBM, 64 MiB VMEM/TC, 2 TCs/chip.
        return 8 * 1024 * 1024, True
    if "v6" in kind:
        # ~1.4 TB/s HBM, 32 MiB default scoped VMEM.
        return 4 * 1024 * 1024, False
    # v5e / unknown: keep 2 MiB (4 buffers = 8 MiB < 16 MiB default scoped VMEM).
    return 2 * 1024 * 1024, False


def _h_swish_kernel(x_ref, o_ref):
    """hard-swish over one (tr, 128) block, streamed in small row chunks.

    Streaming keeps the f32 elementwise temporaries at ~256 KiB regardless of
    how large the DMA block is, so big blocks never blow the VMEM budget.
    """
    rows = x_ref.shape[0]
    n_full = rows // _CHUNK_ROWS
    rem = rows - n_full * _CHUNK_ROWS

    def _apply(xs):
        xf = xs.astype(jnp.float32)
        # x * ReLU6(x + 3) / 6  ==  x * clip(x + 3, 0, 6) * (1/6)
        return (xf * (jnp.clip(xf + 3.0, 0.0, 6.0) * _ONE_SIXTH)).astype(o_ref.dtype)

    if n_full > 0:
        def body(i, carry):
            r0 = pl.multiple_of(i * _CHUNK_ROWS, _CHUNK_ROWS)
            o_ref[pl.ds(r0, _CHUNK_ROWS), :] = _apply(x_ref[pl.ds(r0, _CHUNK_ROWS), :])
            return carry
        lax.fori_loop(0, n_full, body, 0)

    if rem > 0:
        r0 = n_full * _CHUNK_ROWS
        o_ref[pl.ds(r0, rem), :] = _apply(x_ref[pl.ds(r0, rem), :])


def _h_swish_jnp(x):
    """Plain-jnp fallback for the tiny (<128 element) ragged tail."""
    xf = x.astype(jnp.float32)
    return (xf * (jnp.clip(xf + 3.0, 0.0, 6.0) * _ONE_SIXTH)).astype(x.dtype)


def _pallas_hswish_2d(x2d, *, tile_bytes, two_cores):
    """Run the kernel over a lane-dense (n_rows, 128) slab."""
    n_rows, lanes = x2d.shape
    dtype = x2d.dtype
    itemsize = jnp.dtype(dtype).itemsize
    # Native sublane packing: 8 rows for 32-bit, 16 for 16-bit, 32 for 8-bit.
    sublane_mult = max(8, 32 // max(itemsize, 1))

    # Rows per block: ~tile_bytes per buffer, floored to the inner chunk size.
    tr = tile_bytes // (lanes * itemsize)
    tr = max(_CHUNK_ROWS, (tr // _CHUNK_ROWS) * _CHUNK_ROWS)
    if n_rows <= tr:
        if two_cores and n_rows > sublane_mult:
            # v7x: make sure the ("parallel",) grid has >= 2 steps so both
            # TensorCores get work even when the array fits in one tile.
            tr = _round_up(pl.cdiv(n_rows, 2), sublane_mult)
        else:
            # Single block equal to the full array dims (always a legal block).
            tr = n_rows
    grid = (pl.cdiv(n_rows, tr),)

    compiler_kwargs = dict(dimension_semantics=("parallel",))
    block_bytes = tr * lanes * itemsize
    if block_bytes > 4 * 1024 * 1024:
        # 4 double-buffered pipeline buffers of >4 MiB exceed the 32 MiB default
        # scoped VMEM on v7x; raise the limit (64 MiB physical per TC, leave headroom).
        compiler_kwargs["vmem_limit_bytes"] = 48 * 1024 * 1024

    n_elems = n_rows * lanes
    cost = pl.CostEstimate(
        flops=5 * n_elems,            # add, 2x clip, 2x mul per element
        transcendentals=0,
        bytes_accessed=2 * n_elems * itemsize,
    )

    return pl.pallas_call(
        _h_swish_kernel,
        out_shape=jax.ShapeDtypeStruct((n_rows, lanes), dtype),
        grid_spec=pltpu.PrefetchScalarGridSpec(
            num_scalar_prefetch=0,
            grid=grid,
            in_specs=[pl.BlockSpec((tr, lanes), lambda i: (i, 0))],
            out_specs=pl.BlockSpec((tr, lanes), lambda i: (i, 0)),
        ),
        compiler_params=pltpu.CompilerParams(**compiler_kwargs),
        cost_estimate=cost,
    )(x2d)


def h_swish(x: jax.Array, *, tile_bytes: int | None = None) -> jax.Array:
    """Elementwise hard-swish: x * relu6(x + 3) / 6 (matches the PyTorch module).

    Floating-point inputs only (f32 / bf16 / f16). Shape and dtype preserved.
    `tile_bytes=None` picks a TPU-generation-appropriate block size.
    """
    orig_shape = x.shape
    dtype = x.dtype
    if not jnp.issubdtype(dtype, jnp.floating):
        raise TypeError(f"h_swish expects a floating-point input, got {dtype}")

    n = x.size
    if n == 0:
        return x

    default_tile, two_cores = _tpu_config()
    if tile_bytes is None:
        tile_bytes = default_tile

    if n % LANES == 0:
        # Fast path: pure metadata reshape to a lane-dense slab. Works for any
        # 128-aligned size; a ragged-sublane last block is clipped by Pallas.
        x2d = x.reshape(n // LANES, LANES)
        out2d = _pallas_hswish_2d(x2d, tile_bytes=tile_bytes, two_cores=two_cores)
        return out2d.reshape(orig_shape)

    # Truly ragged size (n % 128 != 0) — rare for NCHW activations.
    x_flat = x.reshape(-1)
    n_main = (n // LANES) * LANES
    if n_main == 0:
        # Fewer than 128 elements: not worth a kernel launch.
        return _h_swish_jnp(x_flat).reshape(orig_shape)

    main = _pallas_hswish_2d(
        x_flat[:n_main].reshape(n_main // LANES, LANES),
        tile_bytes=tile_bytes, two_cores=two_cores,
    ).reshape(-1)
    tail = _h_swish_jnp(x_flat[n_main:])
    return jnp.concatenate([main, tail]).reshape(orig_shape)


def _h_swish_ref(x):
    return x * jnp.clip(x + 3.0, 0.0, 6.0) / 6.0


if __name__ == "__main__":
    key = jax.random.PRNGKey(0)
    k1, k2, k3, k4 = jax.random.split(key, 4)

    # Primary check: NCHW input, f32, lane-aligned zero-copy path.
    x = jax.random.normal(k1, (2, 4, 16, 16), dtype=jnp.float32) * 4.0
    out = jax.block_until_ready(h_swish(x))
    assert out.shape == x.shape and out.dtype == x.dtype
    assert jnp.allclose(out, _h_swish_ref(x), atol=1e-5, rtol=1e-6), "f32 mismatch"

    # Lane-aligned but NOT sublane-aligned size (new relaxed fast path, no pad).
    xs = jax.random.normal(k2, (2, 5, 8, 16), dtype=jnp.float32) * 4.0  # 1280 = 10*128
    outs = jax.block_until_ready(h_swish(xs))
    assert jnp.allclose(outs, _h_swish_ref(xs), atol=1e-5, rtol=1e-6), "semi-aligned mismatch"

    # Truly ragged size (prefix kernel + jnp tail, no jnp.pad).
    xr = jax.random.normal(k3, (3, 5, 7, 11), dtype=jnp.float32) * 4.0
    outr = jax.block_until_ready(h_swish(xr))
    assert outr.shape == xr.shape
    assert jnp.allclose(outr, _h_swish_ref(xr), atol=1e-5, rtol=1e-6), "ragged mismatch"

    # bf16 path (computed in f32 in-kernel, rounded once on store).
    xb = (jax.random.normal(k4, (2, 4, 16, 16), dtype=jnp.float32) * 4.0).astype(jnp.bfloat16)
    outb = jax.block_until_ready(h_swish(xb))
    assert outb.dtype == jnp.bfloat16
    assert jnp.allclose(outb.astype(jnp.float32),
                        _h_swish_ref(xb.astype(jnp.float32)),
                        atol=5e-2, rtol=5e-2), "bf16 mismatch"

    print("KERNEL_OK")
</pallas_src>

<mosaic_0001>
module attributes {stable_mosaic.version = 11 : i64} {
  func.func @_h_swish_kernel(%arg0: i32, %arg1: memref<16x128xf32, #tpu.memory_space<vmem>>, %arg2: memref<16x128xf32, #tpu.memory_space<vmem>>) attributes {dimension_semantics = [#tpu.dimension_semantics<parallel>], iteration_bounds = array<i64: 1>, scalar_prefetch = 0 : i64, scratch_operands = 0 : i64, tpu.core_type = #tpu.core_type<tc>, window_params = [{transform_indices = @transform_0, window_bounds = array<i64: 16, 128>}, {transform_indices = @transform_1, window_bounds = array<i64: 16, 128>}]} {
    %c0 = arith.constant 0 : index
    %c0_0 = arith.constant 0 : index
    %0 = vector.load %arg1[%c0, %c0_0] : memref<16x128xf32, #tpu.memory_space<vmem>>, vector<16x128xf32>
    %cst = arith.constant 3.000000e+00 : f32
    %1 = vector.broadcast %cst : f32 to vector<16x128xf32>
    %2 = arith.addf %0, %1 : vector<16x128xf32>
    %cst_1 = arith.constant 0.000000e+00 : f32
    %cst_2 = arith.constant 6.000000e+00 : f32
    %3 = vector.broadcast %cst_1 : f32 to vector<16x128xf32>
    %4 = arith.maximumf %3, %2 : vector<16x128xf32>
    %5 = vector.broadcast %cst_2 : f32 to vector<16x128xf32>
    %6 = arith.minimumf %5, %4 : vector<16x128xf32>
    %cst_3 = arith.constant 0.166666672 : f32
    %7 = vector.broadcast %cst_3 : f32 to vector<16x128xf32>
    %8 = arith.mulf %6, %7 : vector<16x128xf32>
    %9 = arith.mulf %0, %8 : vector<16x128xf32>
    %c0_4 = arith.constant 0 : index
    %c0_5 = arith.constant 0 : index
    %10 = vector.load %arg2[%c0_4, %c0_5] : memref<16x128xf32, #tpu.memory_space<vmem>>, vector<16x128xf32>
    tpu.vector_store %arg2[%c0_4, %c0_5], %9 {strides = array<i32>} : memref<16x128xf32, #tpu.memory_space<vmem>>, vector<16x128xf32>,
    return
  }
  func.func @transform_0(%arg0: i32) -> (i32, i32) {
    %c0_i32 = arith.constant 0 : i32
    %c0_i32_0 = arith.constant 0 : i32
    return %arg0, %c0_i32 : i32, i32
  }
  func.func @transform_1(%arg0: i32) -> (i32, i32) {
    %c0_i32 = arith.constant 0 : i32
    %c0_i32_0 = arith.constant 0 : i32
    return %arg0, %c0_i32 : i32, i32
  }
}

</mosaic_0001>

<llo_original>
// kernel: tpu_custom_call.1
$region0: #{tpu_custom_call.1}
  #allocation0 [shape = 'u32[]', space=smem, size = 0x4, offset = 0x4, fixed_abs, tag = 'smem constant byte address 0x4 - core index']
  #allocation1 [shape = 'u32[144,128]{1,0:T(1,128)}', space=vmem, size = 0x12000, scoped, tag = 'internal scratch']
  %s0 = inlined_call_operand.hbm [shape: f32[16,128], index: 0, kind: input, shape index: {}]
  %s1 = inlined_call_operand.hbm [shape: f32[16,128], index: 1, kind: output, shape index: {}]
  %s2 = sld [smem:[#allocation0]]
  $region18: #{tpu_custom_call.1} parent=0
    _
  %s4 = ssub.s32 1, %s2
  %s5 = scalar_select 0, %s4, %s2
  $region1: #{tpu_custom_call.1} parent=0
    #allocation2 [shape = 'u8[8192]{0}', space=vmem, size = 0x2000, scoped, tag = 'input window, operand 0, single buffered']
    #allocation3 [shape = 's32[1]{0}', space=sflag, size = 0x4, scoped, tag = 'scoped memory for tpu_custom_call.1']
    #allocation4 [shape = 's32[1]{0}', space=sflag, size = 0x4, scoped, tag = 'scoped memory for tpu_custom_call.1']
    #allocation5 [shape = 'u8[8192]{0}', space=vmem, size = 0x2000, scoped, tag = 'output window, operand 0, single buffered']
    %6 = vsyncpa [#allocation3], 0
    %7 = vsyncpa [#allocation4], 0
    // Predicated region
    $region2: #{tpu_custom_call.1} parent=1 // pred_check
      _
    $region3: #{tpu_custom_call.1} parent=1 // pred_check_branch
      %9 = sbr.rel (0) target = $region5
    $region4: #{tpu_custom_call.1} parent=1 // pred_region
      %s11 = ssub.s32 256, 256
      %12 = vsyncadd [#allocation3], %s11
      %s13 = sshll.u32 [#allocation2], 4
      %s14 = int_to_ptr.vmem [resolvable:$true] %s13
      %19 = dma.hbm_to_vmem [thread:$0]  %s0, 256, %s14, [#allocation3], 128, 128, 8
    $region5: #{tpu_custom_call.1} parent=1 // pred_fallthru
      _
    // Predicated region
    $region6: #{tpu_custom_call.1} parent=1 // pred_check
      _
    $region7: #{tpu_custom_call.1} parent=1 // pred_check_branch
      %21 = sbr.rel (0) target = $region9
    $region8: #{tpu_custom_call.1} parent=1 // pred_region
      %22 = dma.done [#allocation3], 256
    $region9: #{tpu_custom_call.1} parent=1 // pred_fallthru
      _
    %v23 = vld [vmem:[#allocation2] sm:$0xff]
    %v24 = vld [vmem:[#allocation2 + $0x8] sm:$0xff]
    %v25 = vadd.f32 %v23, 3.0
    %v26 = vadd.f32 %v24, 3.0
    %v27 = vmax.f32 %v25, 0.0
    %v28 = vmax.f32 %v26, 0.0
    %v29 = vmin.f32 %v27, 6.0
    %v30 = vmin.f32 %v28, 6.0
    %v31 = vmul.f32 %v29, 0.16666667
    %v32 = vmul.f32 %v30, 0.16666667
    %v33 = vmul.f32 %v23, %v31
    %v34 = vmul.f32 %v24, %v32
    %35 = vst [vmem:[#allocation5] sm:$0xff] %v33
    %36 = vst [vmem:[#allocation5 + $0x8] sm:$0xff] %v34
    // Predicated region
    $region10: #{tpu_custom_call.1} parent=1 // pred_check
      _
    $region11: #{tpu_custom_call.1} parent=1 // pred_check_branch
      %38 = sbr.rel (0) target = $region13
    $region12: #{tpu_custom_call.1} parent=1 // pred_region
      %s40 = ssub.s32 256, 256
      %41 = vsyncadd [#allocation4], %s40
      %s42 = sshll.u32 [#allocation5], 4
      %s43 = int_to_ptr.vmem [resolvable:$true] %s42
      %48 = dma.vmem_to_hbm [thread:$0]  %s43, 256, %s1, [#allocation4], 128, 128, 8
    $region13: #{tpu_custom_call.1} parent=1 // pred_fallthru
      _
    // Predicated region
    $region14: #{tpu_custom_call.1} parent=1 // pred_check
      _
    $region15: #{tpu_custom_call.1} parent=1 // pred_check_branch
      %50 = sbr.rel (0) target = $region17
    $region16: #{tpu_custom_call.1} parent=1 // pred_region
      %51 = dma.done [#allocation4], 256
    $region17: #{tpu_custom_call.1} parent=1 // pred_fallthru
      _
    %52 = vsyncpa [#allocation3], 1
    %53 = vsyncpa [#allocation4], 1

</llo_original>
